<compile_context>
chip_gen: v6e
topology: v6e:2x2x1
jax: 0.10.0
libtpu: 0.0.40
codegen_flags: <defaults>
</compile_context>

<pallas_src>
import functools

import jax
import jax.numpy as jnp
from jax import lax
from jax.experimental import pallas as pl
from jax.experimental.pallas import tpu as pltpu

_LANE = 128
_MAX_TILE = 8192                      # lanes per spatial tile (multiple of 128)
_VMEM_BUDGET = 10 * 1024 * 1024       # bytes for 2x-buffered blocks + accumulators


def _tversky_partials_kernel(p_ref, t_ref, o_ref, tp_acc, fp_acc, fn_acc,
                             *, hw, tile, tiles_per_chunk):
    """Accumulates tp/fp/fn over the spatial tiles of one chunk.

    p_ref, t_ref: (N, C, tile) blocks of preds / targets (native dtype).
    o_ref:        (1, 3, 8, 128) per-chunk partial sums (tp, fp, fn).
    *_acc:        (N, tile) float32 VMEM accumulators (persist across the grid).
    """
    k = pl.program_id(1)

    @pl.when(k == 0)
    def _init():
        tp_acc[...] = jnp.zeros_like(tp_acc)
        fp_acc[...] = jnp.zeros_like(fp_acc)
        fn_acc[...] = jnp.zeros_like(fn_acc)

    # Only channels 0 and 1 are used; cast AFTER the DMA so HBM traffic stays
    # in the native dtype.
    p0 = p_ref[:, 0, :].astype(jnp.float32)
    p1 = p_ref[:, 1, :].astype(jnp.float32)
    t0 = t_ref[:, 0, :].astype(jnp.float32)
    t1 = t_ref[:, 1, :].astype(jnp.float32)

    tp_c = p1 * t1   # true positives
    fp_c = p1 * t0   # false positives
    fn_c = p0 * t1   # false negatives

    if hw % tile != 0:
        # Ragged final tile: mask the *products* (not the operands) so garbage
        # in the out-of-bounds pad region can never turn into NaN/Inf.
        start = (pl.program_id(0) * tiles_per_chunk + k) * tile
        lane = lax.broadcasted_iota(jnp.int32, tp_c.shape, dimension=1)
        valid = (start + lane) < hw
        tp_c = jnp.where(valid, tp_c, 0.0)
        fp_c = jnp.where(valid, fp_c, 0.0)
        fn_c = jnp.where(valid, fn_c, 0.0)

    # Pure VPU element-wise accumulation each step; cross-lane reduce only once.
    tp_acc[...] += tp_c
    fp_acc[...] += fp_c
    fn_acc[...] += fn_c

    @pl.when(k == pl.num_programs(1) - 1)
    def _finalize():
        o_ref[0, 0] = jnp.broadcast_to(jnp.sum(tp_acc[...]), (8, _LANE))
        o_ref[0, 1] = jnp.broadcast_to(jnp.sum(fp_acc[...]), (8, _LANE))
        o_ref[0, 2] = jnp.broadcast_to(jnp.sum(fn_acc[...]), (8, _LANE))


def tversky_index(preds, targets, alpha=0.3, beta=0.7, smooth=1e-7):
    """Pallas TPU implementation of TverskyIndex.forward (NCHW inputs)."""
    assert preds.shape == targets.shape
    n, c, h, w = preds.shape
    assert c >= 2, "TverskyIndex uses channels 0 and 1"
    hw = h * w

    # Free contiguous reshape -- no per-channel HBM copies. For very wide
    # channel dims, a single 2-channel slice per array is cheaper than
    # streaming all channels through the kernel.
    if c <= 8:
        p_in = preds.reshape(n, c, hw)
        t_in = targets.reshape(n, c, hw)
    else:
        p_in = preds[:, :2].reshape(n, 2, hw)
        t_in = targets[:, :2].reshape(n, 2, hw)
    nc = p_in.shape[1]

    # Tile the spatial axis so 2x-buffered input blocks + f32 accumulators fit
    # comfortably in scoped VMEM on every generation.
    # TODO(synk): extremely large batch dims would additionally need batch tiling.
    bytes_per_lane = (
        2 * n * nc * (p_in.dtype.itemsize + t_in.dtype.itemsize)  # double-buffered inputs
        + 3 * n * 4                                               # f32 accumulators
    )
    tile = (_VMEM_BUDGET // max(bytes_per_lane, 1) // _LANE) * _LANE
    tile = max(_LANE, min(_MAX_TILE, tile))
    if hw <= tile:
        tile = hw                      # single full-width block, no masking
    num_tiles = pl.cdiv(hw, tile)

    # Leading "parallel" chunk axis: v7x megacore can split the reduction
    # across its two TensorCores (each with its own HBM path).
    num_chunks = 2 if (num_tiles >= 2 and num_tiles % 2 == 0) else 1
    tiles_per_chunk = num_tiles // num_chunks

    kernel = functools.partial(
        _tversky_partials_kernel, hw=hw, tile=tile, tiles_per_chunk=tiles_per_chunk
    )

    spatial_map = lambda p, k: (0, 0, p * tiles_per_chunk + k)

    partials = pl.pallas_call(
        kernel,
        out_shape=jax.ShapeDtypeStruct((num_chunks, 3, 8, _LANE), jnp.float32),
        grid=(num_chunks, tiles_per_chunk),
        in_specs=[
            pl.BlockSpec((n, nc, tile), spatial_map),
            pl.BlockSpec((n, nc, tile), spatial_map),
        ],
        out_specs=pl.BlockSpec((1, 3, 8, _LANE), lambda p, k: (p, 0, 0, 0)),
        scratch_shapes=[pltpu.VMEM((n, tile), jnp.float32)] * 3,
        compiler_params=pltpu.CompilerParams(
            dimension_semantics=("parallel", "arbitrary"),
            vmem_limit_bytes=32 * 1024 * 1024,
        ),
        cost_estimate=pl.CostEstimate(
            flops=6 * n * hw,
            transcendentals=0,
            bytes_accessed=int(
                p_in.size * p_in.dtype.itemsize + t_in.size * t_in.dtype.itemsize
            ),
        ),
    )(p_in, t_in)

    # O(1) epilogue: combine per-chunk partials and form the Tversky ratio.
    tp = jnp.sum(partials[:, 0, 0, 0])
    fp = jnp.sum(partials[:, 1, 0, 0])
    fn = jnp.sum(partials[:, 2, 0, 0])
    return tp / (tp + alpha * fp + beta * fn + smooth)


def _tversky_ref(preds, targets, alpha=0.3, beta=0.7, smooth=1e-7):
    """Pure-JAX reference mirroring the PyTorch forward."""
    tp = jnp.sum(preds[:, 1].astype(jnp.float32) * targets[:, 1].astype(jnp.float32))
    fp = jnp.sum(preds[:, 1].astype(jnp.float32) * targets[:, 0].astype(jnp.float32))
    fn = jnp.sum(preds[:, 0].astype(jnp.float32) * targets[:, 1].astype(jnp.float32))
    return tp / (tp + alpha * fp + beta * fn + smooth)


if __name__ == "__main__":
    key = jax.random.PRNGKey(0)
    k1, k2, k3, k4, k5, k6 = jax.random.split(key, 6)

    # Case 1: module-consistent small NCHW input (single-block path).
    N, C, H, W = 2, 4, 16, 16
    preds = jax.nn.softmax(
        jax.random.normal(k1, (N, C, H, W), dtype=jnp.float32), axis=1
    )
    labels = jax.random.randint(k2, (N, H, W), 0, C)
    targets = jax.nn.one_hot(labels, C, dtype=jnp.float32).transpose(0, 3, 1, 2)
    out = jax.block_until_ready(tversky_index(preds, targets))
    ref = _tversky_ref(preds, targets)
    assert jnp.allclose(out, ref, rtol=1e-5, atol=1e-6), (out, ref)

    # Case 2: larger spatial extent -> tiled grid + 2-way parallel chunk axis.
    preds2 = jax.random.uniform(k3, (2, 2, 128, 128), dtype=jnp.float32)
    targets2 = (jax.random.uniform(k4, (2, 2, 128, 128)) > 0.5).astype(jnp.float32)
    out2 = jax.block_until_ready(tversky_index(preds2, targets2))
    ref2 = _tversky_ref(preds2, targets2)
    assert jnp.allclose(out2, ref2, rtol=1e-4, atol=1e-6), (out2, ref2)

    # Case 3: ragged spatial extent + bf16 preds -> masked edge tile, in-kernel cast.
    preds3 = jax.random.uniform(k5, (1, 2, 100, 100)).astype(jnp.bfloat16)
    targets3 = (jax.random.uniform(k6, (1, 2, 100, 100)) > 0.5).astype(jnp.float32)
    out3 = jax.block_until_ready(tversky_index(preds3, targets3))
    ref3 = _tversky_ref(preds3, targets3)
    assert jnp.allclose(out3, ref3, rtol=1e-4, atol=1e-6), (out3, ref3)

    print("KERNEL_OK")
</pallas_src>

<mosaic_0001>
module attributes {stable_mosaic.version = 11 : i64} {
  func.func @_tversky_partials_kernel(%arg0: i32, %arg1: i32, %arg2: memref<2x4x256xf32, #tpu.memory_space<vmem>>, %arg3: memref<2x4x256xf32, #tpu.memory_space<vmem>>, %arg4: memref<1x3x8x128xf32, #tpu.memory_space<vmem>>, %arg5: memref<2x256xf32, #tpu.memory_space<vmem>>, %arg6: memref<2x256xf32, #tpu.memory_space<vmem>>, %arg7: memref<2x256xf32, #tpu.memory_space<vmem>>) attributes {dimension_semantics = [#tpu.dimension_semantics<parallel>, #tpu.dimension_semantics<arbitrary>], iteration_bounds = array<i64: 1, 1>, scalar_prefetch = 0 : i64, scratch_operands = 3 : i64, tpu.core_type = #tpu.core_type<tc>, window_params = [{transform_indices = @transform_0, window_bounds = array<i64: 2, 4, 256>}, {transform_indices = @transform_1, window_bounds = array<i64: 2, 4, 256>}, {transform_indices = @transform_2, window_bounds = array<i64: 1, 3, 8, 128>}]} {
    %c0_i32 = arith.constant 0 : i32
    %0 = arith.cmpi eq, %arg1, %c0_i32 : i32
    %1 = arith.extui %0 : i1 to i32
    %c0_i32_0 = arith.constant 0 : i32
    %2 = arith.cmpi ne, %1, %c0_i32_0 : i32
    scf.if %2 {
      %cst = arith.constant 0.000000e+00 : f32
      %26 = vector.broadcast %cst : f32 to vector<2x256xf32>
      %c0_25 = arith.constant 0 : index
      %c0_26 = arith.constant 0 : index
      %27 = vector.load %arg5[%c0_25, %c0_26] : memref<2x256xf32, #tpu.memory_space<vmem>>, vector<2x256xf32>
      tpu.vector_store %arg5[%c0_25, %c0_26], %26 {strides = array<i32>} : memref<2x256xf32, #tpu.memory_space<vmem>>, vector<2x256xf32>,
      %cst_27 = arith.constant 0.000000e+00 : f32
      %28 = vector.broadcast %cst_27 : f32 to vector<2x256xf32>
      %c0_28 = arith.constant 0 : index
      %c0_29 = arith.constant 0 : index
      %29 = vector.load %arg6[%c0_28, %c0_29] : memref<2x256xf32, #tpu.memory_space<vmem>>, vector<2x256xf32>
      tpu.vector_store %arg6[%c0_28, %c0_29], %28 {strides = array<i32>} : memref<2x256xf32, #tpu.memory_space<vmem>>, vector<2x256xf32>,
      %cst_30 = arith.constant 0.000000e+00 : f32
      %30 = vector.broadcast %cst_30 : f32 to vector<2x256xf32>
      %c0_31 = arith.constant 0 : index
      %c0_32 = arith.constant 0 : index
      %31 = vector.load %arg7[%c0_31, %c0_32] : memref<2x256xf32, #tpu.memory_space<vmem>>, vector<2x256xf32>
      tpu.vector_store %arg7[%c0_31, %c0_32], %30 {strides = array<i32>} : memref<2x256xf32, #tpu.memory_space<vmem>>, vector<2x256xf32>,
    } else {
    }
    %c0 = arith.constant 0 : index
    %c0_1 = arith.constant 0 : index
    %c0_2 = arith.constant 0 : index
    %3 = vector.load %arg2[%c0, %c0_1, %c0_2] : memref<2x4x256xf32, #tpu.memory_space<vmem>>, vector<2x1x256xf32>
    %4 = vector.shape_cast %3 : vector<2x1x256xf32> to vector<2x256xf32>
    %c0_3 = arith.constant 0 : index
    %c1 = arith.constant 1 : index
    %c0_4 = arith.constant 0 : index
    %5 = vector.load %arg2[%c0_3, %c1, %c0_4] : memref<2x4x256xf32, #tpu.memory_space<vmem>>, vector<2x1x256xf32>
    %6 = vector.shape_cast %5 : vector<2x1x256xf32> to vector<2x256xf32>
    %c0_5 = arith.constant 0 : index
    %c0_6 = arith.constant 0 : index
    %c0_7 = arith.constant 0 : index
    %7 = vector.load %arg3[%c0_5, %c0_6, %c0_7] : memref<2x4x256xf32, #tpu.memory_space<vmem>>, vector<2x1x256xf32>
    %8 = vector.shape_cast %7 : vector<2x1x256xf32> to vector<2x256xf32>
    %c0_8 = arith.constant 0 : index
    %c1_9 = arith.constant 1 : index
    %c0_10 = arith.constant 0 : index
    %9 = vector.load %arg3[%c0_8, %c1_9, %c0_10] : memref<2x4x256xf32, #tpu.memory_space<vmem>>, vector<2x1x256xf32>
    %10 = vector.shape_cast %9 : vector<2x1x256xf32> to vector<2x256xf32>
    %11 = arith.mulf %6, %10 : vector<2x256xf32>
    %12 = arith.mulf %6, %8 : vector<2x256xf32>
    %13 = arith.mulf %4, %10 : vector<2x256xf32>
    %c0_11 = arith.constant 0 : index
    %c0_12 = arith.constant 0 : index
    %14 = vector.load %arg5[%c0_11, %c0_12] : memref<2x256xf32, #tpu.memory_space<vmem>>, vector<2x256xf32>
    %15 = arith.addf %14, %11 : vector<2x256xf32>
    %c0_13 = arith.constant 0 : index
    %c0_14 = arith.constant 0 : index
    %16 = vector.load %arg5[%c0_13, %c0_14] : memref<2x256xf32, #tpu.memory_space<vmem>>, vector<2x256xf32>
    tpu.vector_store %arg5[%c0_13, %c0_14], %15 {strides = array<i32>} : memref<2x256xf32, #tpu.memory_space<vmem>>, vector<2x256xf32>,
    %c0_15 = arith.constant 0 : index
    %c0_16 = arith.constant 0 : index
    %17 = vector.load %arg6[%c0_15, %c0_16] : memref<2x256xf32, #tpu.memory_space<vmem>>, vector<2x256xf32>
    %18 = arith.addf %17, %12 : vector<2x256xf32>
    %c0_17 = arith.constant 0 : index
    %c0_18 = arith.constant 0 : index
    %19 = vector.load %arg6[%c0_17, %c0_18] : memref<2x256xf32, #tpu.memory_space<vmem>>, vector<2x256xf32>
    tpu.vector_store %arg6[%c0_17, %c0_18], %18 {strides = array<i32>} : memref<2x256xf32, #tpu.memory_space<vmem>>, vector<2x256xf32>,
    %c0_19 = arith.constant 0 : index
    %c0_20 = arith.constant 0 : index
    %20 = vector.load %arg7[%c0_19, %c0_20] : memref<2x256xf32, #tpu.memory_space<vmem>>, vector<2x256xf32>
    %21 = arith.addf %20, %13 : vector<2x256xf32>
    %c0_21 = arith.constant 0 : index
    %c0_22 = arith.constant 0 : index
    %22 = vector.load %arg7[%c0_21, %c0_22] : memref<2x256xf32, #tpu.memory_space<vmem>>, vector<2x256xf32>
    tpu.vector_store %arg7[%c0_21, %c0_22], %21 {strides = array<i32>} : memref<2x256xf32, #tpu.memory_space<vmem>>, vector<2x256xf32>,
    %c0_i32_23 = arith.constant 0 : i32
    %23 = arith.cmpi eq, %arg1, %c0_i32_23 : i32
    %24 = arith.extui %23 : i1 to i32
    %c0_i32_24 = arith.constant 0 : i32
    %25 = arith.cmpi ne, %24, %c0_i32_24 : i32
    scf.if %25 {
      %c0_25 = arith.constant 0 : index
      %c0_26 = arith.constant 0 : index
      %26 = vector.load %arg5[%c0_25, %c0_26] : memref<2x256xf32, #tpu.memory_space<vmem>>, vector<2x256xf32>
      %27 = vector.shape_cast %26 : vector<2x256xf32> to vector<1x2x256xf32>
      %cst = arith.constant dense<0.000000e+00> : vector<1xf32>
      %28 = vector.multi_reduction <add>, %27, %cst [1, 2] : vector<1x2x256xf32> to vector<1xf32>
      %29 = vector.shape_cast %28 : vector<1xf32> to vector<1x1x1xf32>
      %30 = vector.extract %29[0, 0, 0] : f32 from vector<1x1x1xf32>
      %31 = vector.broadcast %30 : f32 to vector<8x128xf32>
      %c0_27 = arith.constant 0 : index
      %c0_28 = arith.constant 0 : index
      %c0_29 = arith.constant 0 : index
      %c0_30 = arith.constant 0 : index
      %32 = vector.load %arg4[%c0_27, %c0_28, %c0_29, %c0_30] : memref<1x3x8x128xf32, #tpu.memory_space<vmem>>, vector<1x1x8x128xf32>
      %33 = vector.shape_cast %32 : vector<1x1x8x128xf32> to vector<8x128xf32>
      %34 = vector.shape_cast %31 : vector<8x128xf32> to vector<1x1x8x128xf32>
      tpu.vector_store %arg4[%c0_27, %c0_28, %c0_29, %c0_30], %34 {strides = array<i32>} : memref<1x3x8x128xf32, #tpu.memory_space<vmem>>, vector<1x1x8x128xf32>,
      %c0_31 = arith.constant 0 : index
      %c0_32 = arith.constant 0 : index
      %35 = vector.load %arg6[%c0_31, %c0_32] : memref<2x256xf32, #tpu.memory_space<vmem>>, vector<2x256xf32>
      %36 = vector.shape_cast %35 : vector<2x256xf32> to vector<1x2x256xf32>
      %cst_33 = arith.constant dense<0.000000e+00> : vector<1xf32>
      %37 = vector.multi_reduction <add>, %36, %cst_33 [1, 2] : vector<1x2x256xf32> to vector<1xf32>
      %38 = vector.shape_cast %37 : vector<1xf32> to vector<1x1x1xf32>
      %39 = vector.extract %38[0, 0, 0] : f32 from vector<1x1x1xf32>
      %40 = vector.broadcast %39 : f32 to vector<8x128xf32>
      %c0_34 = arith.constant 0 : index
      %c1_35 = arith.constant 1 : index
      %c0_36 = arith.constant 0 : index
      %c0_37 = arith.constant 0 : index
      %41 = vector.load %arg4[%c0_34, %c1_35, %c0_36, %c0_37] : memref<1x3x8x128xf32, #tpu.memory_space<vmem>>, vector<1x1x8x128xf32>
      %42 = vector.shape_cast %41 : vector<1x1x8x128xf32> to vector<8x128xf32>
      %43 = vector.shape_cast %40 : vector<8x128xf32> to vector<1x1x8x128xf32>
      tpu.vector_store %arg4[%c0_34, %c1_35, %c0_36, %c0_37], %43 {strides = array<i32>} : memref<1x3x8x128xf32, #tpu.memory_space<vmem>>, vector<1x1x8x128xf32>,
      %c0_38 = arith.constant 0 : index
      %c0_39 = arith.constant 0 : index
      %44 = vector.load %arg7[%c0_38, %c0_39] : memref<2x256xf32, #tpu.memory_space<vmem>>, vector<2x256xf32>
      %45 = vector.shape_cast %44 : vector<2x256xf32> to vector<1x2x256xf32>
      %cst_40 = arith.constant dense<0.000000e+00> : vector<1xf32>
      %46 = vector.multi_reduction <add>, %45, %cst_40 [1, 2] : vector<1x2x256xf32> to vector<1xf32>
      %47 = vector.shape_cast %46 : vector<1xf32> to vector<1x1x1xf32>
      %48 = vector.extract %47[0, 0, 0] : f32 from vector<1x1x1xf32>
      %49 = vector.broadcast %48 : f32 to vector<8x128xf32>
      %c0_41 = arith.constant 0 : index
      %c2 = arith.constant 2 : index
      %c0_42 = arith.constant 0 : index
      %c0_43 = arith.constant 0 : index
      %50 = vector.load %arg4[%c0_41, %c2, %c0_42, %c0_43] : memref<1x3x8x128xf32, #tpu.memory_space<vmem>>, vector<1x1x8x128xf32>
      %51 = vector.shape_cast %50 : vector<1x1x8x128xf32> to vector<8x128xf32>
      %52 = vector.shape_cast %49 : vector<8x128xf32> to vector<1x1x8x128xf32>
      tpu.vector_store %arg4[%c0_41, %c2, %c0_42, %c0_43], %52 {strides = array<i32>} : memref<1x3x8x128xf32, #tpu.memory_space<vmem>>, vector<1x1x8x128xf32>,
    } else {
    }
    return
  }
  func.func @transform_0(%arg0: i32, %arg1: i32) -> (i32, i32, i32) {
    %c1_i32 = arith.constant 1 : i32
    %0 = arith.muli %arg0, %c1_i32 : i32
    %1 = arith.addi %0, %arg1 : i32
    %c0_i32 = arith.constant 0 : i32
    %c0_i32_0 = arith.constant 0 : i32
    %c0_i32_1 = arith.constant 0 : i32
    return %c0_i32, %c0_i32_0, %1 : i32, i32, i32
  }
  func.func @transform_1(%arg0: i32, %arg1: i32) -> (i32, i32, i32) {
    %c1_i32 = arith.constant 1 : i32
    %0 = arith.muli %arg0, %c1_i32 : i32
    %1 = arith.addi %0, %arg1 : i32
    %c0_i32 = arith.constant 0 : i32
    %c0_i32_0 = arith.constant 0 : i32
    %c0_i32_1 = arith.constant 0 : i32
    return %c0_i32, %c0_i32_0, %1 : i32, i32, i32
  }
  func.func @transform_2(%arg0: i32, %arg1: i32) -> (i32, i32, i32, i32) {
    %c0_i32 = arith.constant 0 : i32
    %c0_i32_0 = arith.constant 0 : i32
    %c0_i32_1 = arith.constant 0 : i32
    %c0_i32_2 = arith.constant 0 : i32
    return %arg0, %c0_i32, %c0_i32_0, %c0_i32_1 : i32, i32, i32, i32
  }
}

</mosaic_0001>

<llo_original>
// kernel: tpu_custom_call.1
$region0: #{tpu_custom_call.1}
  #allocation0 [shape = 'u32[]', space=smem, size = 0x4, offset = 0x4, fixed_abs, tag = 'smem constant byte address 0x4 - core index']
  #allocation1 [shape = 'u32[144,128]{1,0:T(1,128)}', space=vmem, size = 0x12000, scoped, tag = 'internal scratch']
  #allocation2 [shape = 'f32[2,256]{1,0:T(2,128)}', space=vmem, size = 0x800, scoped, tag = 'scratch operand']
  #allocation3 [shape = 'f32[2,256]{1,0:T(2,128)}', space=vmem, size = 0x800, scoped, tag = 'scratch operand']
  #allocation4 [shape = 'f32[2,256]{1,0:T(2,128)}', space=vmem, size = 0x800, scoped, tag = 'scratch operand']
  %s0 = inlined_call_operand.hbm [shape: f32[2,4,256], index: 0, kind: input, shape index: {}]
  %s1 = inlined_call_operand.hbm [shape: f32[2,4,256], index: 1, kind: input, shape index: {}]
  %s2 = inlined_call_operand.hbm [shape: f32[1,3,8,128], index: 2, kind: output, shape index: {}]
  %s3 = sld [smem:[#allocation0]]
  $region34: #{tpu_custom_call.1} parent=0
    _
  %s5 = ssub.s32 1, %s3
  %s6 = scalar_select 0, %s5, %s3
  $region1: #{tpu_custom_call.1} parent=0
    #allocation5 [shape = 'u8[8192]{0}', space=vmem, size = 0x2000, scoped, tag = 'input window, operand 0, single buffered']
    #allocation6 [shape = 's32[1]{0}', space=sflag, size = 0x4, scoped, tag = 'scoped memory for tpu_custom_call.1']
    #allocation7 [shape = 's32[1]{0}', space=sflag, size = 0x4, scoped, tag = 'scoped memory for tpu_custom_call.1']
    #allocation8 [shape = 'u8[8192]{0}', space=vmem, size = 0x2000, scoped, tag = 'input window, operand 1, single buffered']
    #allocation9 [shape = 's32[1]{0}', space=sflag, size = 0x4, scoped, tag = 'scoped memory for tpu_custom_call.1']
    #allocation10 [shape = 'u8[12288]{0}', space=vmem, size = 0x3000, scoped, tag = 'output window, operand 0, single buffered']
    %7 = vsyncpa [#allocation6], 0
    %8 = vsyncpa [#allocation9], 0
    %9 = vsyncpa [#allocation7], 0
    // Predicated region
    $region2: #{tpu_custom_call.1} parent=1 // pred_check
      _
    $region3: #{tpu_custom_call.1} parent=1 // pred_check_branch
      %11 = sbr.rel (0) target = $region5
    $region4: #{tpu_custom_call.1} parent=1 // pred_region
      %s12 = sadd.s32 0, 0
      %s13 = smul.u32 2, %s12
      %s15 = ssub.s32 256, 256
      %16 = vsyncadd [#allocation6], %s15
      %s17 = smul.addr %s13, 64
      %s18 = scalar_lea.hbm %s0, %s17
      %s19 = sshll.u32 [#allocation5], 4
      %s20 = int_to_ptr.vmem [resolvable:$true] %s19
      %25 = dma.hbm_to_vmem [thread:$0]  %s18, 256, %s20, [#allocation6], 128, 128, 8
    $region5: #{tpu_custom_call.1} parent=1 // pred_fallthru
      _
    // Predicated region
    $region6: #{tpu_custom_call.1} parent=1 // pred_check
      _
    $region7: #{tpu_custom_call.1} parent=1 // pred_check_branch
      %27 = sbr.rel (0) target = $region9
    $region8: #{tpu_custom_call.1} parent=1 // pred_region
      %s28 = sadd.s32 0, 0
      %s29 = smul.u32 2, %s28
      %s31 = ssub.s32 256, 256
      %32 = vsyncadd [#allocation9], %s31
      %s33 = smul.addr %s29, 64
      %s34 = scalar_lea.hbm %s1, %s33
      %s35 = sshll.u32 [#allocation8], 4
      %s36 = int_to_ptr.vmem [resolvable:$true] %s35
      %41 = dma.hbm_to_vmem [thread:$0]  %s34, 256, %s36, [#allocation9], 128, 128, 8
    $region9: #{tpu_custom_call.1} parent=1 // pred_fallthru
      _
    // Predicated region
    $region10: #{tpu_custom_call.1} parent=1 // pred_check
      _
    $region11: #{tpu_custom_call.1} parent=1 // pred_check_branch
      %43 = sbr.rel (0) target = $region13
    $region12: #{tpu_custom_call.1} parent=1 // pred_region
      %44 = dma.done [#allocation6], 256
    $region13: #{tpu_custom_call.1} parent=1 // pred_fallthru
      _
    // Predicated region
    $region14: #{tpu_custom_call.1} parent=1 // pred_check
      _
    $region15: #{tpu_custom_call.1} parent=1 // pred_check_branch
      %46 = sbr.rel (0) target = $region17
    $region16: #{tpu_custom_call.1} parent=1 // pred_region
      %47 = dma.done [#allocation9], 256
    $region17: #{tpu_custom_call.1} parent=1 // pred_fallthru
      _
    %s48 = sadd.s32 0, 0
    %s49 = smul.u32 2, %s48
    %s50 = sadd.s32 0, 0
    %s51 = smul.u32 2, %s50
    %p52 = scmp.eq.s32.totalorder 0, 0
    // Predicated region
    $region18: #{tpu_custom_call.1} parent=1 // pred_check
      %p53 = pneg %p52
    $region19: #{tpu_custom_call.1} parent=1 // pred_check_branch
      %55 = sbr.rel (%p53) target = $region21
    $region20: #{tpu_custom_call.1} parent=1 // pred_region
      %56 = vst [vmem:[#allocation2] sm:$0xf] 0.0
      %57 = vst [vmem:[#allocation3] sm:$0xf] 0.0
      %58 = vst [vmem:[#allocation4] sm:$0xf] 0.0
    $region21: #{tpu_custom_call.1} parent=1 // pred_fallthru
      _
    %v59 = vld [vmem:[#allocation5] ss:$4 sm:$0x3]
    %s60 = scalar_lea.vmem [#allocation5], 8
    %v61 = vld [vmem:[%s60] ss:$4 sm:$0x3]
    %s62 = scalar_lea.vmem [#allocation5], 1
    %v63 = vld [vmem:[%s62] ss:$4 sm:$0x3]
    %s64 = scalar_lea.vmem [#allocation5], 9
    %v65 = vld [vmem:[%s64] ss:$4 sm:$0x3]
    %v66 = vld [vmem:[#allocation8] ss:$4 sm:$0x3]
    %s67 = scalar_lea.vmem [#allocation8], 8
    %v68 = vld [vmem:[%s67] ss:$4 sm:$0x3]
    %s69 = scalar_lea.vmem [#allocation8], 1
    %v70 = vld [vmem:[%s69] ss:$4 sm:$0x3]
    %s71 = scalar_lea.vmem [#allocation8], 9
    %v72 = vld [vmem:[%s71] ss:$4 sm:$0x3]
    %v73 = vmul.f32 %v63, %v70
    %v74 = vmul.f32 %v65, %v72
    %v75 = vmul.f32 %v63, %v66
    %v76 = vmul.f32 %v65, %v68
    %v77 = vmul.f32 %v59, %v70
    %v78 = vmul.f32 %v61, %v72
    %v79 = vld [vmem:[#allocation2] sm:$0xf]
    %v82 = vcombine.low %v73, %v74
    %v84 = vunpack.c.l.s4 1935823168
    %v85 = vunpack.c.0.s8 %v84
    %v86 = vlaneseq
    %v87 = vshrl.u32 %v86, 7
    %v88 = vsub.s32 %v85, %v87
    %v89 = vrot.slane %v82, %v88
    %v91 = vadd.f32 %v79, %v89
    %92 = vst [vmem:[#allocation2] sm:$0xf] %v91
    %v93 = vld [vmem:[#allocation3] sm:$0xf]
    %v96 = vcombine.low %v75, %v76
    %v98 = vunpack.c.l.s4 1935823168
    %v99 = vunpack.c.0.s8 %v98
    %v100 = vlaneseq
    %v101 = vshrl.u32 %v100, 7
    %v102 = vsub.s32 %v99, %v101
    %v103 = vrot.slane %v96, %v102
    %v105 = vadd.f32 %v93, %v103
    %106 = vst [vmem:[#allocation3] sm:$0xf] %v105
    %v107 = vld [vmem:[#allocation4] sm:$0xf]
    %v110 = vcombine.low %v77, %v78
    %v112 = vunpack.c.l.s4 1935823168
    %v113 = vunpack.c.0.s8 %v112
    %v114 = vlaneseq
    %v115 = vshrl.u32 %v114, 7
    %v116 = vsub.s32 %v113, %v115
    %v117 = vrot.slane %v110, %v116
    %v119 = vadd.f32 %v107, %v117
    %120 = vst [vmem:[#allocation4] sm:$0xf] %v119
    // Predicated region
    $region22: #{tpu_custom_call.1} parent=1 // pred_check
      %p121 = pneg %p52
    $region23: #{tpu_custom_call.1} parent=1 // pred_check_branch
      %123 = sbr.rel (%p121) target = $region25
    $region24: #{tpu_custom_call.1} parent=1 // pred_region
      %v124 = vld [vmem:[#allocation2] sm:$0xf]
      %v127 = vunpack.c.l.s4 1983009808
      %v128 = vunpack.c.0.s8 %v127
      %v129 = vlaneseq
      %v130 = vshrl.u32 %v129, 7
      %v131 = vsub.s32 %v128, %v130
      %v132 = vrot.slane %v124, %v131
      %v133 = vcombine.high %v132, %v132
      %vm136 = vcmask 1041408
      %v137 = vsel %vm136, %v132, 0.0
      %v138 = vsel %vm136, %v133, 0.0
      %v139 = vadd.f32 %v137, %v138
      %140 = vadd.xlane.f32.xlu0 %v139
      %v141 = vpop.xlane.xlu0 %140
      %v142 = vrot.slane %v141, 4
      %v143 = vadd.f32 %v141, %v142
      %v144 = vrot.slane %v143, 2
      %v145 = vadd.f32 %v143, %v144
      %v146 = vrot.slane %v145, 1
      %v147 = vadd.f32 %v145, %v146
      %s148 = vtos %v147
      %v149 = vstv %s148
      %150 = vst [vmem:[#allocation10] sm:$0xff] %v149
      %v151 = vld [vmem:[#allocation3] sm:$0xf]
      %v154 = vunpack.c.l.s4 1983009808
      %v155 = vunpack.c.0.s8 %v154
      %v156 = vlaneseq
      %v157 = vshrl.u32 %v156, 7
      %v158 = vsub.s32 %v155, %v157
      %v159 = vrot.slane %v151, %v158
      %v160 = vcombine.high %v159, %v159
      %v163 = vsel %vm136, %v159, 0.0
      %v164 = vsel %vm136, %v160, 0.0
      %v165 = vadd.f32 %v163, %v164
      %166 = vadd.xlane.f32.xlu0 %v165
      %v167 = vpop.xlane.xlu0 %166
      %v168 = vrot.slane %v167, 4
      %v169 = vadd.f32 %v167, %v168
      %v170 = vrot.slane %v169, 2
      %v171 = vadd.f32 %v169, %v170
      %v172 = vrot.slane %v171, 1
      %v173 = vadd.f32 %v171, %v172
      %s174 = vtos %v173
      %v175 = vstv %s174
      %s176 = scalar_lea.vmem [#allocation10], 8
      %177 = vst [vmem:[%s176] sm:$0xff] %v175
      %v178 = vld [vmem:[#allocation4] sm:$0xf]
      %v181 = vunpack.c.l.s4 1983009808
      %v182 = vunpack.c.0.s8 %v181
      %v183 = vlaneseq
      %v184 = vshrl.u32 %v183, 7
      %v185 = vsub.s32 %v182, %v184
      %v186 = vrot.slane %v178, %v185
      %v187 = vcombine.high %v186, %v186
      %v190 = vsel %vm136, %v186, 0.0
      %v191 = vsel %vm136, %v187, 0.0
      %v192 = vadd.f32 %v190, %v191
      %193 = vadd.xlane.f32.xlu0 %v192
      %v194 = vpop.xlane.xlu0 %193
      %v195 = vrot.slane %v194, 4
      %v196 = vadd.f32 %v194, %v195
      %v197 = vrot.slane %v196, 2
      %v198 = vadd.f32 %v196, %v197
      %v199 = vrot.slane %v198, 1
      %v200 = vadd.f32 %v198, %v199
      %s201 = vtos %v200
      %v202 = vstv %s201
      %s203 = scalar_lea.vmem [#allocation10], 16
      %204 = vst [vmem:[%s203] sm:$0xff] %v202
    $region25: #{tpu_custom_call.1} parent=1 // pred_fallthru
      _
    // Predicated region
    $region26: #{tpu_custom_call.1} parent=1 // pred_check
      _
    $region27: #{tpu_custom_call.1} parent=1 // pred_check_branch
      %206 = sbr.rel (0) target = $region29
    $region28: #{tpu_custom_call.1} parent=1 // pred_region
      %s208 = ssub.s32 384, 384
      %209 = vsyncadd [#allocation7], %s208
      %s210 = sshll.u32 [#allocation10], 4
      %s211 = int_to_ptr.vmem [resolvable:$true] %s210
      %216 = dma.vmem_to_hbm [thread:$0]  %s211, 384, %s2, [#allocation7], 128, 128, 8
    $region29: #{tpu_custom_call.1} parent=1 // pred_fallthru
      _
    // Predicated region
    $region30: #{tpu_custom_call.1} parent=1 // pred_check
      _
    $region31: #{tpu_custom_call.1} parent=1 // pred_check_branch
      %218 = sbr.rel (0) target = $region33
    $region32: #{tpu_custom_call.1} parent=1 // pred_region
      %219 = dma.done [#allocation7], 384
    $region33: #{tpu_custom_call.1} parent=1 // pred_fallthru
      _
    %220 = vsyncpa [#allocation6], 1
    %221 = vsyncpa [#allocation9], 1
    %222 = vsyncpa [#allocation7], 1

</llo_original>
